<compile_context>
chip_gen: v7x
topology: tpu7x:2x2x1
jax: 0.10.0
libtpu: 0.0.40
codegen_flags: <defaults>
</compile_context>

<pallas_src>
import jax
import jax.numpy as jnp
from jax.experimental import pallas as pl
from jax.experimental.pallas import tpu as pltpu

D_IN, D_H1, D_H2, D_OUT = 43, 200, 100, 3
TB_MAX = 2048  # batch-tile cap (lane axis)


def q_mlp_kernel(x_ref, w1_ref, w2_ref, w3_ref, b_ref, o_ref):
    # Feature-major: x_ref is (43, tb); batch lives on the lane (last) axis.
    x = x_ref[...]

    # Biases packed column-wise into one (200, 3) f32 array:
    #   col 0 -> b1[0:200], col 1 -> b2[0:100], col 2 -> b3[0:3]  (rest zero)
    b1 = b_ref[0:D_H1, 0:1]    # (200, 1) -> broadcasts over the batch lanes
    b2 = b_ref[0:D_H2, 1:2]    # (100, 1)
    b3 = b_ref[0:D_OUT, 2:3]   # (3, 1)

    # fc1 + ReLU : (200, 43) @ (43, tb) -> (200, tb)
    h1 = jnp.dot(w1_ref[...], x, preferred_element_type=jnp.float32) + b1
    h1 = jnp.maximum(h1, 0.0)

    # fc2 + ReLU : (100, 200) @ (200, tb) -> (100, tb)
    h2 = jnp.dot(w2_ref[...], h1, preferred_element_type=jnp.float32) + b2
    h2 = jnp.maximum(h2, 0.0)

    # fc3 : (3, 100) @ (100, tb) -> (3, tb)
    logits = jnp.dot(w3_ref[...], h2, preferred_element_type=jnp.float32) + b3

    # softmax over the feature axis (axis 0 here == torch dim=1)
    m = jnp.max(logits, axis=0, keepdims=True)
    e = jnp.exp(logits - m)
    denom = jnp.sum(e, axis=0, keepdims=True)
    o_ref[...] = (e * pl.reciprocal(denom, approx=True)).astype(o_ref.dtype)


def _round_up(v, m):
    return ((v + m - 1) // m) * m


def _choose_tb(b):
    """Batch-tile (lane) size.

    * b <= 512: one exact block (block dims == array dims, no raggedness).
    * b  > 512: lane-dense multiples of 128, capped at TB_MAX, and chosen so the
      grid has >= 2 steps (feeds both TensorCores on v7x; harmless elsewhere).
      The last block may be ragged -- Pallas masks the writeback; garbage in the
      out-of-bounds columns never mixes into valid columns (all ops are
      column-independent).
    """
    if b <= 512:
        return b
    return min(TB_MAX, _round_up((b + 1) // 2, 128))


def q_forward_t(x_t, params):
    """Feature-major fast path: x_t is [43, B] f32 -> [3, B] (columns sum to 1)."""
    w1, w2, w3, b_packed = params
    B = x_t.shape[1]
    tb = _choose_tb(B)
    grid = (pl.cdiv(B, tb),)

    flops = 2 * B * (D_IN * D_H1 + D_H1 * D_H2 + D_H2 * D_OUT)
    bytes_accessed = 4 * (
        B * D_IN                                      # x
        + D_H1 * D_IN + D_H2 * D_H1 + D_OUT * D_H2    # weights
        + D_H1 * 3                                    # packed biases
        + B * D_OUT                                   # output
    )

    return pl.pallas_call(
        q_mlp_kernel,
        out_shape=jax.ShapeDtypeStruct((D_OUT, B), jnp.float32),
        grid=grid,
        in_specs=[
            pl.BlockSpec((D_IN, tb), lambda i: (0, i)),     # x tile (pipelined)
            pl.BlockSpec((D_H1, D_IN), lambda i: (0, 0)),   # w1 (VMEM-resident)
            pl.BlockSpec((D_H2, D_H1), lambda i: (0, 0)),   # w2 (VMEM-resident)
            pl.BlockSpec((D_OUT, D_H2), lambda i: (0, 0)),  # w3 (VMEM-resident)
            pl.BlockSpec((D_H1, 3), lambda i: (0, 0)),      # packed biases
        ],
        out_specs=pl.BlockSpec((D_OUT, tb), lambda i: (0, i)),  # lane-dense output
        compiler_params=pltpu.CompilerParams(
            dimension_semantics=("parallel",),
            vmem_limit_bytes=32 * 1024 * 1024),
        cost_estimate=pl.CostEstimate(
            flops=flops,
            transcendentals=B * (D_OUT + 1),
            bytes_accessed=bytes_accessed),
    )(x_t, w1, w2, w3, b_packed)


def q_forward(x, params):
    """Module-semantics wrapper: x [B, 43] f32 -> [B, 3] f32 (rows sum to 1)."""
    return q_forward_t(x.T, params).T


def init_params(key):
    """Deterministic init mimicking nn.Linear default (uniform +/- 1/sqrt(fan_in)).

    Weights stored torch-style as [out, in]; biases packed into one (200, 3) array."""
    dims = [(D_IN, D_H1), (D_H1, D_H2), (D_H2, D_OUT)]
    ws, bs = [], []
    for fan_in, fan_out in dims:
        kw, kb, key = jax.random.split(key, 3)
        bound = 1.0 / jnp.sqrt(jnp.float32(fan_in))
        ws.append(jax.random.uniform(kw, (fan_out, fan_in), jnp.float32, -bound, bound))
        bs.append(jax.random.uniform(kb, (fan_out,), jnp.float32, -bound, bound))
    b_packed = jnp.zeros((D_H1, 3), jnp.float32)
    b_packed = b_packed.at[:D_H1, 0].set(bs[0])
    b_packed = b_packed.at[:D_H2, 1].set(bs[1])
    b_packed = b_packed.at[:D_OUT, 2].set(bs[2])
    return (ws[0], ws[1], ws[2], b_packed)


def q_forward_ref(x, params):
    w1, w2, w3, b_packed = params
    b1 = b_packed[:D_H1, 0]
    b2 = b_packed[:D_H2, 1]
    b3 = b_packed[:D_OUT, 2]
    h1 = jnp.maximum(x @ w1.T + b1, 0.0)
    h2 = jnp.maximum(h1 @ w2.T + b2, 0.0)
    return jax.nn.softmax(h2 @ w3.T + b3, axis=1)


if __name__ == "__main__":
    key = jax.random.PRNGKey(0)
    kx, kx2, kp = jax.random.split(key, 3)
    params = init_params(kp)

    # Small batch: single exact block (block dims == array dims).
    B = 8
    x = jax.random.normal(kx, (B, D_IN), jnp.float32)
    out = jax.block_until_ready(q_forward(x, params))
    ref = q_forward_ref(x, params)
    assert out.shape == (B, D_OUT)
    assert jnp.allclose(out, ref, atol=5e-3, rtol=5e-3)
    assert jnp.allclose(jnp.sum(out, axis=1), jnp.ones((B,)), atol=5e-3)

    # Mid-size, non-multiple batch: 2-step parallel grid with a ragged last block.
    B2 = 1000
    x2 = jax.random.normal(kx2, (B2, D_IN), jnp.float32)
    out2 = jax.block_until_ready(q_forward(x2, params))
    ref2 = q_forward_ref(x2, params)
    assert out2.shape == (B2, D_OUT)
    assert jnp.allclose(out2, ref2, atol=5e-3, rtol=5e-3)
    assert jnp.allclose(jnp.sum(out2, axis=1), jnp.ones((B2,)), atol=5e-3)

    print("KERNEL_OK")
</pallas_src>

<mosaic_0001>
module attributes {stable_mosaic.version = 11 : i64} {
  func.func @q_mlp_kernel(%arg0: i32, %arg1: memref<43x8xf32, #tpu.memory_space<vmem>>, %arg2: memref<200x43xf32, #tpu.memory_space<vmem>>, %arg3: memref<100x200xf32, #tpu.memory_space<vmem>>, %arg4: memref<3x100xf32, #tpu.memory_space<vmem>>, %arg5: memref<200x3xf32, #tpu.memory_space<vmem>>, %arg6: memref<3x8xf32, #tpu.memory_space<vmem>>) attributes {dimension_semantics = [#tpu.dimension_semantics<parallel>], iteration_bounds = array<i64: 1>, scalar_prefetch = 0 : i64, scratch_operands = 0 : i64, tpu.core_type = #tpu.core_type<tc>, window_params = [{transform_indices = @transform_0, window_bounds = array<i64: 43, 8>}, {pipeline_mode = #tpu.pipeline_mode<synchronous>, transform_indices = @transform_1, window_bounds = array<i64: 200, 43>}, {pipeline_mode = #tpu.pipeline_mode<synchronous>, transform_indices = @transform_2, window_bounds = array<i64: 100, 200>}, {pipeline_mode = #tpu.pipeline_mode<synchronous>, transform_indices = @transform_3, window_bounds = array<i64: 3, 100>}, {pipeline_mode = #tpu.pipeline_mode<synchronous>, transform_indices = @transform_4, window_bounds = array<i64: 200, 3>}, {transform_indices = @transform_5, window_bounds = array<i64: 3, 8>}]} {
    %c0 = arith.constant 0 : index
    %c0_0 = arith.constant 0 : index
    %0 = vector.load %arg1[%c0, %c0_0] : memref<43x8xf32, #tpu.memory_space<vmem>>, vector<43x8xf32>
    %c0_1 = arith.constant 0 : index
    %c0_2 = arith.constant 0 : index
    %1 = vector.load %arg5[%c0_1, %c0_2] : memref<200x3xf32, #tpu.memory_space<vmem>>, vector<200x1xf32>
    %c0_3 = arith.constant 0 : index
    %c1 = arith.constant 1 : index
    %2 = vector.load %arg5[%c0_3, %c1] : memref<200x3xf32, #tpu.memory_space<vmem>>, vector<100x1xf32>
    %c0_4 = arith.constant 0 : index
    %c2 = arith.constant 2 : index
    %3 = vector.load %arg5[%c0_4, %c2] : memref<200x3xf32, #tpu.memory_space<vmem>>, vector<3x1xf32>
    %c0_5 = arith.constant 0 : index
    %c0_6 = arith.constant 0 : index
    %4 = vector.load %arg2[%c0_5, %c0_6] : memref<200x43xf32, #tpu.memory_space<vmem>>, vector<200x43xf32>
    %cst = arith.constant dense<0.000000e+00> : vector<200x8xf32>
    %5 = tpu.matmul %4, %0, %cst {dimension_numbers = #tpu.dot_dimension_numbers<[1], [0], [0], [1], [0, 0, 1, 1], [], []>} : vector<200x43xf32>, vector<43x8xf32>, vector<200x8xf32> -> vector<200x8xf32>
    %6 = vector.broadcast %1 : vector<200x1xf32> to vector<200x8xf32>
    %7 = arith.addf %5, %6 : vector<200x8xf32>
    %cst_7 = arith.constant 0.000000e+00 : f32
    %8 = vector.broadcast %cst_7 : f32 to vector<200x8xf32>
    %9 = arith.maximumf %7, %8 : vector<200x8xf32>
    %c0_8 = arith.constant 0 : index
    %c0_9 = arith.constant 0 : index
    %10 = vector.load %arg3[%c0_8, %c0_9] : memref<100x200xf32, #tpu.memory_space<vmem>>, vector<100x200xf32>
    %cst_10 = arith.constant dense<0.000000e+00> : vector<100x8xf32>
    %11 = tpu.matmul %10, %9, %cst_10 {dimension_numbers = #tpu.dot_dimension_numbers<[1], [0], [0], [1], [0, 0, 1, 1], [], []>} : vector<100x200xf32>, vector<200x8xf32>, vector<100x8xf32> -> vector<100x8xf32>
    %12 = vector.broadcast %2 : vector<100x1xf32> to vector<100x8xf32>
    %13 = arith.addf %11, %12 : vector<100x8xf32>
    %cst_11 = arith.constant 0.000000e+00 : f32
    %14 = vector.broadcast %cst_11 : f32 to vector<100x8xf32>
    %15 = arith.maximumf %13, %14 : vector<100x8xf32>
    %c0_12 = arith.constant 0 : index
    %c0_13 = arith.constant 0 : index
    %16 = vector.load %arg4[%c0_12, %c0_13] : memref<3x100xf32, #tpu.memory_space<vmem>>, vector<3x100xf32>
    %cst_14 = arith.constant dense<0.000000e+00> : vector<3x8xf32>
    %17 = tpu.matmul %16, %15, %cst_14 {dimension_numbers = #tpu.dot_dimension_numbers<[1], [0], [0], [1], [0, 0, 1, 1], [], []>} : vector<3x100xf32>, vector<100x8xf32>, vector<3x8xf32> -> vector<3x8xf32>
    %18 = vector.broadcast %3 : vector<3x1xf32> to vector<3x8xf32>
    %19 = arith.addf %17, %18 : vector<3x8xf32>
    %cst_15 = arith.constant dense<0xFF800000> : vector<8xf32>
    %20 = vector.multi_reduction <maximumf>, %19, %cst_15 [0] : vector<3x8xf32> to vector<8xf32>
    %21 = vector.shape_cast %20 : vector<8xf32> to vector<1x8xf32>
    %22 = vector.broadcast %21 : vector<1x8xf32> to vector<3x8xf32>
    %23 = arith.subf %19, %22 : vector<3x8xf32>
    %24 = math.exp %23 : vector<3x8xf32>
    %cst_16 = arith.constant dense<0.000000e+00> : vector<8xf32>
    %25 = vector.multi_reduction <add>, %24, %cst_16 [0] : vector<3x8xf32> to vector<8xf32>
    %26 = vector.shape_cast %25 : vector<8xf32> to vector<1x8xf32>
    %27 = tpu.reciprocal %26 {approx = true} : vector<1x8xf32> -> vector<1x8xf32>
    %28 = vector.broadcast %27 : vector<1x8xf32> to vector<3x8xf32>
    %29 = arith.mulf %24, %28 : vector<3x8xf32>
    %c0_17 = arith.constant 0 : index
    %c0_18 = arith.constant 0 : index
    %30 = vector.load %arg6[%c0_17, %c0_18] : memref<3x8xf32, #tpu.memory_space<vmem>>, vector<3x8xf32>
    tpu.vector_store %arg6[%c0_17, %c0_18], %29 {strides = array<i32>} : memref<3x8xf32, #tpu.memory_space<vmem>>, vector<3x8xf32>,
    return
  }
  func.func @transform_0(%arg0: i32) -> (i32, i32) {
    %c0_i32 = arith.constant 0 : i32
    %c0_i32_0 = arith.constant 0 : i32
    return %c0_i32, %arg0 : i32, i32
  }
  func.func @transform_1(%arg0: i32) -> (i32, i32) {
    %c0_i32 = arith.constant 0 : i32
    %c0_i32_0 = arith.constant 0 : i32
    %c0_i32_1 = arith.constant 0 : i32
    return %c0_i32, %c0_i32_0 : i32, i32
  }
  func.func @transform_2(%arg0: i32) -> (i32, i32) {
    %c0_i32 = arith.constant 0 : i32
    %c0_i32_0 = arith.constant 0 : i32
    %c0_i32_1 = arith.constant 0 : i32
    return %c0_i32, %c0_i32_0 : i32, i32
  }
  func.func @transform_3(%arg0: i32) -> (i32, i32) {
    %c0_i32 = arith.constant 0 : i32
    %c0_i32_0 = arith.constant 0 : i32
    %c0_i32_1 = arith.constant 0 : i32
    return %c0_i32, %c0_i32_0 : i32, i32
  }
  func.func @transform_4(%arg0: i32) -> (i32, i32) {
    %c0_i32 = arith.constant 0 : i32
    %c0_i32_0 = arith.constant 0 : i32
    %c0_i32_1 = arith.constant 0 : i32
    return %c0_i32, %c0_i32_0 : i32, i32
  }
  func.func @transform_5(%arg0: i32) -> (i32, i32) {
    %c0_i32 = arith.constant 0 : i32
    %c0_i32_0 = arith.constant 0 : i32
    return %c0_i32, %arg0 : i32, i32
  }
}

</mosaic_0001>

<llo_original>
// kernel: tpu_custom_call.1
$region0: #{tpu_custom_call.1}
  #allocation0 [shape = 'u32[]', space=smem, size = 0x4, offset = 0x4, fixed_abs, tag = 'smem constant byte address 0x4 - core index']
  #allocation1 [shape = 'u32[144,128]{1,0:T(1,128)}', space=vmem, size = 0x12000, scoped, tag = 'internal scratch']
  %s0 = inlined_call_operand.vmem [shape: f32[43,8], index: 0, kind: input, shape index: {}]
  %s1 = inlined_call_operand.vmem [shape: f32[200,43], index: 1, kind: input, shape index: {}]
  %s2 = inlined_call_operand.vmem [shape: f32[100,200], index: 2, kind: input, shape index: {}]
  %s3 = inlined_call_operand.vmem [shape: f32[3,100], index: 3, kind: input, shape index: {}]
  %s4 = inlined_call_operand.vmem [shape: f32[200,3], index: 4, kind: input, shape index: {}]
  %s5 = inlined_call_operand.hbm [shape: f32[3,8], index: 5, kind: output, shape index: {}]
  %s6 = sld [smem:[#allocation0]]
  $region30: #{tpu_custom_call.1} parent=0
    _
  %s8 = ssub.s32 1, %s6
  %s9 = scalar_select 0, %s8, %s6
  $region1: #{tpu_custom_call.1} parent=0
    #allocation2 [shape = 'u8[2048]{0}', space=vmem, size = 0x800, scoped, tag = 'output window, operand 0, single buffered']
    #allocation3 [shape = 's32[1]{0}', space=sflag, size = 0x4, scoped, tag = 'scoped memory for tpu_custom_call.1']
    %10 = vsyncpa [#allocation3], 0
    // Predicated region
    $region2: #{tpu_custom_call.1} parent=1 // pred_check
      _
    $region3: #{tpu_custom_call.1} parent=1 // pred_check_branch
      %12 = sbr.rel (0) target = $region5
    $region4: #{tpu_custom_call.1} parent=1 // pred_region
      _
    $region5: #{tpu_custom_call.1} parent=1 // pred_fallthru
      _
    // Predicated region
    $region6: #{tpu_custom_call.1} parent=1 // pred_check
      _
    $region7: #{tpu_custom_call.1} parent=1 // pred_check_branch
      %14 = sbr.rel (0) target = $region9
    $region8: #{tpu_custom_call.1} parent=1 // pred_region
      _
    $region9: #{tpu_custom_call.1} parent=1 // pred_fallthru
      _
    // Predicated region
    $region10: #{tpu_custom_call.1} parent=1 // pred_check
      _
    $region11: #{tpu_custom_call.1} parent=1 // pred_check_branch
      %16 = sbr.rel (0) target = $region13
    $region12: #{tpu_custom_call.1} parent=1 // pred_region
      _
    $region13: #{tpu_custom_call.1} parent=1 // pred_fallthru
      _
    // Predicated region
    $region14: #{tpu_custom_call.1} parent=1 // pred_check
      _
    $region15: #{tpu_custom_call.1} parent=1 // pred_check_branch
      %18 = sbr.rel (0) target = $region17
    $region16: #{tpu_custom_call.1} parent=1 // pred_region
      _
    $region17: #{tpu_custom_call.1} parent=1 // pred_fallthru
      _
    // Predicated region
    $region18: #{tpu_custom_call.1} parent=1 // pred_check
      _
    $region19: #{tpu_custom_call.1} parent=1 // pred_check_branch
      %20 = sbr.rel (0) target = $region21
    $region20: #{tpu_custom_call.1} parent=1 // pred_region
      _
    $region21: #{tpu_custom_call.1} parent=1 // pred_fallthru
      _
    %v21 = vld [vmem:[%s0] sm:$0xff]
    %v22 = vld [vmem:[%s0 + $0x8] sm:$0xff]
    %v23 = vld [vmem:[%s0 + $0x10] sm:$0xff]
    %v24 = vld [vmem:[%s0 + $0x18] sm:$0xff]
    %v25 = vld [vmem:[%s0 + $0x20] sm:$0xff]
    %v26 = vld [vmem:[%s0 + $0x28] sm:$0x7]
    %v27 = vld [vmem:[%s4] sm:$0xff]
    %v28 = vld [vmem:[%s4 + $0x8] sm:$0xff]
    %v29 = vld [vmem:[%s4 + $0x10] sm:$0xff]
    %v30 = vld [vmem:[%s4 + $0x18] sm:$0xff]
    %v31 = vld [vmem:[%s4 + $0x20] sm:$0xff]
    %v32 = vld [vmem:[%s4 + $0x28] sm:$0xff]
    %v33 = vld [vmem:[%s4 + $0x30] sm:$0xff]
    %v34 = vld [vmem:[%s4 + $0x38] sm:$0xff]
    %v35 = vld [vmem:[%s4 + $0x40] sm:$0xff]
    %v36 = vld [vmem:[%s4 + $0x48] sm:$0xff]
    %v37 = vld [vmem:[%s4 + $0x50] sm:$0xff]
    %v38 = vld [vmem:[%s4 + $0x58] sm:$0xff]
    %v39 = vld [vmem:[%s4 + $0x60] sm:$0xff]
    %v40 = vld [vmem:[%s4 + $0x68] sm:$0xff]
    %v41 = vld [vmem:[%s4 + $0x70] sm:$0xff]
    %v42 = vld [vmem:[%s4 + $0x78] sm:$0xff]
    %v43 = vld [vmem:[%s4 + $0x80] sm:$0xff]
    %v44 = vld [vmem:[%s4 + $0x88] sm:$0xff]
    %v45 = vld [vmem:[%s4 + $0x90] sm:$0xff]
    %v46 = vld [vmem:[%s4 + $0x98] sm:$0xff]
    %v47 = vld [vmem:[%s4 + $0xa0] sm:$0xff]
    %v48 = vld [vmem:[%s4 + $0xa8] sm:$0xff]
    %v49 = vld [vmem:[%s4 + $0xb0] sm:$0xff]
    %v50 = vld [vmem:[%s4 + $0xb8] sm:$0xff]
    %v51 = vld [vmem:[%s4 + $0xc0] sm:$0xff]
    %v52 = vld [vmem:[%s4 + $0x60] sm:$0xf]
    %v53 = vld [vmem:[%s4] sm:$0x7]
    %v54 = vld [vmem:[%s1] sm:$0xff]
    %v55 = vld [vmem:[%s1 + $0x8] sm:$0xff]
    %v56 = vld [vmem:[%s1 + $0x10] sm:$0xff]
    %v57 = vld [vmem:[%s1 + $0x18] sm:$0xff]
    %v58 = vld [vmem:[%s1 + $0x20] sm:$0xff]
    %v59 = vld [vmem:[%s1 + $0x28] sm:$0xff]
    %v60 = vld [vmem:[%s1 + $0x30] sm:$0xff]
    %v61 = vld [vmem:[%s1 + $0x38] sm:$0xff]
    %v62 = vld [vmem:[%s1 + $0x40] sm:$0xff]
    %v63 = vld [vmem:[%s1 + $0x48] sm:$0xff]
    %v64 = vld [vmem:[%s1 + $0x50] sm:$0xff]
    %v65 = vld [vmem:[%s1 + $0x58] sm:$0xff]
    %v66 = vld [vmem:[%s1 + $0x60] sm:$0xff]
    %v67 = vld [vmem:[%s1 + $0x68] sm:$0xff]
    %v68 = vld [vmem:[%s1 + $0x70] sm:$0xff]
    %v69 = vld [vmem:[%s1 + $0x78] sm:$0xff]
    %v70 = vld [vmem:[%s1 + $0x80] sm:$0xff]
    %v71 = vld [vmem:[%s1 + $0x88] sm:$0xff]
    %v72 = vld [vmem:[%s1 + $0x90] sm:$0xff]
    %v73 = vld [vmem:[%s1 + $0x98] sm:$0xff]
    %v74 = vld [vmem:[%s1 + $0xa0] sm:$0xff]
    %v75 = vld [vmem:[%s1 + $0xa8] sm:$0xff]
    %v76 = vld [vmem:[%s1 + $0xb0] sm:$0xff]
    %v77 = vld [vmem:[%s1 + $0xb8] sm:$0xff]
    %v78 = vld [vmem:[%s1 + $0xc0] sm:$0xff]
    %80 = vset.pattern.permute.xlu0 0
    %81 = vperm.xlu0 %80, %v27
    %v82 = vpop.permute.xlu0 %81
    %85 = vset.pattern.permute.xlu0 0
    %86 = vperm.xlu0 %85, %v28
    %v87 = vpop.permute.xlu0 %86
    %90 = vset.pattern.permute.xlu0 0
    %91 = vperm.xlu0 %90, %v29
    %v92 = vpop.permute.xlu0 %91
    %95 = vset.pattern.permute.xlu0 0
    %96 = vperm.xlu0 %95, %v30
    %v97 = vpop.permute.xlu0 %96
    %100 = vset.pattern.permute.xlu0 0
    %101 = vperm.xlu0 %100, %v31
    %v102 = vpop.permute.xlu0 %101
    %105 = vset.pattern.permute.xlu0 0
    %106 = vperm.xlu0 %105, %v32
    %v107 = vpop.permute.xlu0 %106
    %110 = vset.pattern.permute.xlu0 0
    %111 = vperm.xlu0 %110, %v33
    %v112 = vpop.permute.xlu0 %111
    %115 = vset.pattern.permute.xlu0 0
    %116 = vperm.xlu0 %115, %v34
    %v117 = vpop.permute.xlu0 %116
    %120 = vset.pattern.permute.xlu0 0
    %121 = vperm.xlu0 %120, %v35
    %v122 = vpop.permute.xlu0 %121
    %125 = vset.pattern.permute.xlu0 0
    %126 = vperm.xlu0 %125, %v36
    %v127 = vpop.permute.xlu0 %126
    %130 = vset.pattern.permute.xlu0 0
    %131 = vperm.xlu0 %130, %v37
    %v132 = vpop.permute.xlu0 %131
    %135 = vset.pattern.permute.xlu0 0
    %136 = vperm.xlu0 %135, %v38
    %v137 = vpop.permute.xlu0 %136
    %140 = vset.pattern.permute.xlu0 0
    %141 = vperm.xlu0 %140, %v39
    %v142 = vpop.permute.xlu0 %141
    %145 = vset.pattern.permute.xlu0 0
    %146 = vperm.xlu0 %145, %v40
    %v147 = vpop.permute.xlu0 %146
    %150 = vset.pattern.permute.xlu0 0
    %151 = vperm.xlu0 %150, %v41
    %v152 = vpop.permute.xlu0 %151
    %155 = vset.pattern.permute.xlu0 0
    %156 = vperm.xlu0 %155, %v42
    %v157 = vpop.permute.xlu0 %156
    %160 = vset.pattern.permute.xlu0 0
    %161 = vperm.xlu0 %160, %v43
    %v162 = vpop.permute.xlu0 %161
    %165 = vset.pattern.permute.xlu0 0
    %166 = vperm.xlu0 %165, %v44
    %v167 = vpop.permute.xlu0 %166
    %170 = vset.pattern.permute.xlu0 0
    %171 = vperm.xlu0 %170, %v45
    %v172 = vpop.permute.xlu0 %171
    %175 = vset.pattern.permute.xlu0 0
    %176 = vperm.xlu0 %175, %v46
    %v177 = vpop.permute.xlu0 %176
    %180 = vset.pattern.permute.xlu0 0
    %181 = vperm.xlu0 %180, %v47
    %v182 = vpop.permute.xlu0 %181
    %185 = vset.pattern.permute.xlu0 0
    %186 = vperm.xlu0 %185, %v48
    %v187 = vpop.permute.xlu0 %186
    %190 = vset.pattern.permute.xlu0 0
    %191 = vperm.xlu0 %190, %v49
    %v192 = vpop.permute.xlu0 %191
    %195 = vset.pattern.permute.xlu0 0
    %196 = vperm.xlu0 %195, %v50
    %v197 = vpop.permute.xlu0 %196
    %200 = vset.pattern.permute.xlu0 0
    %201 = vperm.xlu0 %200, %v51
    %v202 = vpop.permute.xlu0 %201
    %vm204 = vcmask 351232
    %v206 = vsel %vm204, %v54, 0
    %v209 = vsel %vm204, %v55, 0
    %v212 = vsel %vm204, %v56, 0
    %v215 = vsel %vm204, %v57, 0
    %v218 = vsel %vm204, %v58, 0
    %v221 = vsel %vm204, %v59, 0
    %v224 = vsel %vm204, %v60, 0
    %v227 = vsel %vm204, %v61, 0
    %v230 = vsel %vm204, %v62, 0
    %v233 = vsel %vm204, %v63, 0
    %v236 = vsel %vm204, %v64, 0
    %v239 = vsel %vm204, %v65, 0
    %v242 = vsel %vm204, %v66, 0
    %v245 = vsel %vm204, %v67, 0
    %v248 = vsel %vm204, %v68, 0
    %v251 = vsel %vm204, %v69, 0
    %v254 = vsel %vm204, %v70, 0
    %v257 = vsel %vm204, %v71, 0
    %v260 = vsel %vm204, %v72, 0
    %v263 = vsel %vm204, %v73, 0
    %v266 = vsel %vm204, %v74, 0
    %v269 = vsel %vm204, %v75, 0
    %v272 = vsel %vm204, %v76, 0
    %v275 = vsel %vm204, %v77, 0
    %v278 = vsel %vm204, %v78, 0
    %vm280 = vcmask 1042432
    %v282 = vsel %vm280, %v26, 0
    %284 = vmatprep.subr.mxu0 0.0
    %285 = vmatpush1.msra.mxu0 %v21
    %286 = vmatprep.subr.mxu0 0.0
    %287 = vmatpush1.msra.mxu0 %v22
    %288 = vmatprep.subr.mxu0 0.0
    %289 = vmatpush1.msra.mxu0 %v23
    %290 = vmatprep.subr.mxu0 0.0
    %291 = vmatpush1.msra.mxu0 %v24
    %292 = vmatprep.subr.mxu0 0.0
    %293 = vmatpush1.msra.mxu0 %v25
    %294 = vmatprep.subr.mxu0 0.0
    %295 = vmatpush1.msra.mxu0 %v282
    %296 = vmatprep.subr.mxu0 0.0
    %297 = vmatpush1.msra.mxu0 0.0
    %298 = vmatprep.subr.mxu0 0.0
    %299 = vmatpush1.msra.mxu0 0.0
    %300 = vmatprep.subr.mxu0 0.0
    %301 = vmatpush1.msra.mxu0 0.0
    %302 = vmatprep.subr.mxu0 0.0
    %303 = vmatpush1.msra.mxu0 0.0
    %304 = vmatprep.subr.mxu0 0.0
    %305 = vmatpush1.msra.mxu0 0.0
    %306 = vmatprep.subr.mxu0 0.0
    %307 = vmatpush1.msra.mxu0 0.0
    %308 = vmatprep.subr.mxu0 0.0
    %309 = vmatpush1.msra.mxu0 0.0
    %310 = vmatprep.subr.mxu0 0.0
    %311 = vmatpush1.msra.mxu0 0.0
    %312 = vmatprep.subr.mxu0 0.0
    %313 = vmatpush1.msra.mxu0 0.0
    %314 = vmatprep.subr.mxu0 0.0
    %315 = vmatpush1.msra.mxu0 0.0
    %316 = vmatprep.subr.mxu0 0.0
    %317 = vmatpush1.msra.mxu0 0.0
    %318 = vmatprep.subr.mxu0 0.0
    %319 = vmatpush1.msra.mxu0 0.0
    %320 = vmatprep.subr.mxu0 0.0
    %321 = vmatpush1.msra.mxu0 0.0
    %322 = vmatprep.subr.mxu0 0.0
    %323 = vmatpush1.msra.mxu0 0.0
    %324 = vmatprep.subr.mxu0 0.0
    %325 = vmatpush1.msra.mxu0 0.0
    %326 = vmatprep.subr.mxu0 0.0
    %327 = vmatpush1.msra.mxu0 0.0
    %328 = vmatprep.subr.mxu0 0.0
    %329 = vmatpush1.msra.mxu0 0.0
    %330 = vmatprep.subr.mxu0 0.0
    %331 = vmatpush1.msra.mxu0 0.0
    %332 = vmatprep.subr.mxu0 0.0
    %333 = vmatpush1.msra.mxu0 0.0
    %334 = vmatprep.subr.mxu0 0.0
    %335 = vmatpush1.msra.mxu0 0.0
    %336 = vmatprep.subr.mxu0 0.0
    %337 = vmatpush1.msra.mxu0 0.0
    %338 = vmatprep.subr.mxu0 0.0
    %339 = vmatpush1.msra.mxu0 0.0
    %340 = vmatprep.subr.mxu0 0.0
    %341 = vmatpush1.msra.mxu0 0.0
    %342 = vmatprep.subr.mxu0 0.0
    %343 = vmatpush1.msra.mxu0 0.0
    %344 = vmatprep.subr.mxu0 0.0
    %345 = vmatpush1.msra.mxu0 0.0
    %346 = vmatprep.subr.mxu0 0.0
    %347 = vmatpush1.msra.mxu0 0.0
    %348 = vmatprep.mubr.f32.mxu0 0.0
    %349 = vmatmul.mubr.f32.gmra.mrb[0].mxu0 %v206
    %v350 = vpop.f32.mrb[0].mxu0
    %v351 = vadd.f32 %v82, %v350
    %v352 = vpop.f32.mrb[0].mxu0
    %353 = vmatprep.mubr.f32.mxu0 0.0
    %354 = vmatmul.mubr.f32.gmra.mrb[0].mxu0 %v209
    %v355 = vpop.f32.mrb[0].mxu0
    %v356 = vadd.f32 %v87, %v355
    %v357 = vpop.f32.mrb[0].mxu0
    %358 = vmatprep.mubr.f32.mxu0 0.0
    %359 = vmatmul.mubr.f32.gmra.mrb[0].mxu0 %v212
    %v360 = vpop.f32.mrb[0].mxu0
    %v361 = vadd.f32 %v92, %v360
    %v362 = vpop.f32.mrb[0].mxu0
    %363 = vmatprep.mubr.f32.mxu0 0.0
    %364 = vmatmul.mubr.f32.gmra.mrb[0].mxu0 %v215
    %v365 = vpop.f32.mrb[0].mxu0
    %v366 = vadd.f32 %v97, %v365
    %v367 = vpop.f32.mrb[0].mxu0
    %368 = vmatprep.mubr.f32.mxu0 0.0
    %369 = vmatmul.mubr.f32.gmra.mrb[0].mxu0 %v218
    %v370 = vpop.f32.mrb[0].mxu0
    %v371 = vadd.f32 %v102, %v370
    %v372 = vpop.f32.mrb[0].mxu0
    %373 = vmatprep.mubr.f32.mxu0 0.0
    %374 = vmatmul.mubr.f32.gmra.mrb[0].mxu0 %v221
    %v375 = vpop.f32.mrb[0].mxu0
    %v376 = vadd.f32 %v107, %v375
    %v377 = vpop.f32.mrb[0].mxu0
    %378 = vmatprep.mubr.f32.mxu0 0.0
    %379 = vmatmul.mubr.f32.gmra.mrb[0].mxu0 %v224
    %v380 = vpop.f32.mrb[0].mxu0
    %v381 = vadd.f32 %v112, %v380
    %v382 = vpop.f32.mrb[0].mxu0
    %383 = vmatprep.mubr.f32.mxu0 0.0
    %384 = vmatmul.mubr.f32.gmra.mrb[0].mxu0 %v227
    %v385 = vpop.f32.mrb[0].mxu0
    %v386 = vadd.f32 %v117, %v385
    %v387 = vpop.f32.mrb[0].mxu0
    %388 = vmatprep.mubr.f32.mxu0 0.0
    %389 = vmatmul.mubr.f32.gmra.mrb[0].mxu0 %v230
    %v390 = vpop.f32.mrb[0].mxu0
    %v391 = vadd.f32 %v122, %v390
    %v392 = vpop.f32.mrb[0].mxu0
    %393 = vmatprep.mubr.f32.mxu0 0.0
    %394 = vmatmul.mubr.f32.gmra.mrb[0].mxu0 %v233
    %v395 = vpop.f32.mrb[0].mxu0
    %v396 = vadd.f32 %v127, %v395
    %v397 = vpop.f32.mrb[0].mxu0
    %398 = vmatprep.mubr.f32.mxu0 0.0
    %399 = vmatmul.mubr.f32.gmra.mrb[0].mxu0 %v236
    %v400 = vpop.f32.mrb[0].mxu0
    %v401 = vadd.f32 %v132, %v400
    %v402 = vpop.f32.mrb[0].mxu0
    %403 = vmatprep.mubr.f32.mxu0 0.0
    %404 = vmatmul.mubr.f32.gmra.mrb[0].mxu0 %v239
    %v405 = vpop.f32.mrb[0].mxu0
    %v406 = vadd.f32 %v137, %v405
    %v407 = vpop.f32.mrb[0].mxu0
    %408 = vmatprep.mubr.f32.mxu0 0.0
    %409 = vmatmul.mubr.f32.gmra.mrb[0].mxu0 %v242
    %v410 = vpop.f32.mrb[0].mxu0
    %v411 = vadd.f32 %v142, %v410
    %v412 = vpop.f32.mrb[0].mxu0
    %413 = vmatprep.mubr.f32.mxu0 0.0
    %414 = vmatmul.mubr.f32.gmra.mrb[0].mxu0 %v245
    %v415 = vpop.f32.mrb[0].mxu0
    %v416 = vadd.f32 %v147, %v415
    %v417 = vpop.f32.mrb[0].mxu0
    %418 = vmatprep.mubr.f32.mxu0 0.0
    %419 = vmatmul.mubr.f32.gmra.mrb[0].mxu0 %v248
    %v420 = vpop.f32.mrb[0].mxu0
    %v421 = vadd.f32 %v152, %v420
    %v422 = vpop.f32.mrb[0].mxu0
    %423 = vmatprep.mubr.f32.mxu0 0.0
    %424 = vmatmul.mubr.f32.gmra.mrb[0].mxu0 %v251
    %v425 = vpop.f32.mrb[0].mxu0
    %v426 = vadd.f32 %v157, %v425
    %v427 = vpop.f32.mrb[0].mxu0
    %428 = vmatprep.mubr.f32.mxu0 0.0
    %429 = vmatmul.mubr.f32.gmra.mrb[0].mxu0 %v254
    %v430 = vpop.f32.mrb[0].mxu0
    %v431 = vadd.f32 %v162, %v430
    %v432 = vpop.f32.mrb[0].mxu0
    %433 = vmatprep.mubr.f32.mxu0 0.0
    %434 = vmatmul.mubr.f32.gmra.mrb[0].mxu0 %v257
    %v435 = vpop.f32.mrb[0].mxu0
    %v436 = vadd.f32 %v167, %v435
    %v437 = vpop.f32.mrb[0].mxu0
    %438 = vmatprep.mubr.f32.mxu0 0.0
    %439 = vmatmul.mubr.f32.gmra.mrb[0].mxu0 %v260
    %v440 = vpop.f32.mrb[0].mxu0
    %v441 = vadd.f32 %v172, %v440
    %v442 = vpop.f32.mrb[0].mxu0
    %443 = vmatprep.mubr.f32.mxu0 0.0
    %444 = vmatmul.mubr.f32.gmra.mrb[0].mxu0 %v263
    %v445 = vpop.f32.mrb[0].mxu0
    %v446 = vadd.f32 %v177, %v445
    %v447 = vpop.f32.mrb[0].mxu0
    %448 = vmatprep.mubr.f32.mxu0 0.0
    %449 = vmatmul.mubr.f32.gmra.mrb[0].mxu0 %v266
    %v450 = vpop.f32.mrb[0].mxu0
    %v451 = vadd.f32 %v182, %v450
    %v452 = vpop.f32.mrb[0].mxu0
    %453 = vmatprep.mubr.f32.mxu0 0.0
    %454 = vmatmul.mubr.f32.gmra.mrb[0].mxu0 %v269
    %v455 = vpop.f32.mrb[0].mxu0
    %v456 = vadd.f32 %v187, %v455
    %v457 = vpop.f32.mrb[0].mxu0
    %458 = vmatprep.mubr.f32.mxu0 0.0
    %459 = vmatmul.mubr.f32.gmra.mrb[0].mxu0 %v272
    %v460 = vpop.f32.mrb[0].mxu0
    %v461 = vadd.f32 %v192, %v460
    %v462 = vpop.f32.mrb[0].mxu0
    %463 = vmatprep.mubr.f32.mxu0 0.0
    %464 = vmatmul.mubr.f32.gmra.mrb[0].mxu0 %v275
    %v465 = vpop.f32.mrb[0].mxu0
    %v466 = vadd.f32 %v197, %v465
    %v467 = vpop.f32.mrb[0].mxu0
    %468 = vmatprep.mubr.f32.mxu0 0.0
    %469 = vmatmul.mubr.f32.gmra.mrb[0].mxu0 %v278
    %v470 = vpop.f32.mrb[0].mxu0
    %v471 = vadd.f32 %v202, %v470
    %v472 = vpop.f32.mrb[0].mxu0
    %473 = vdwg.mxu0
    %v474 = vmax.f32 %v351, 0.0
    %v475 = vmax.f32 %v356, 0.0
    %v476 = vmax.f32 %v361, 0.0
    %v477 = vmax.f32 %v366, 0.0
    %v478 = vmax.f32 %v371, 0.0
    %v479 = vmax.f32 %v376, 0.0
    %v480 = vmax.f32 %v381, 0.0
    %v481 = vmax.f32 %v386, 0.0
    %v482 = vmax.f32 %v391, 0.0
    %v483 = vmax.f32 %v396, 0.0
    %v484 = vmax.f32 %v401, 0.0
    %v485 = vmax.f32 %v406, 0.0
    %v486 = vmax.f32 %v411, 0.0
    %v487 = vmax.f32 %v416, 0.0
    %v488 = vmax.f32 %v421, 0.0
    %v489 = vmax.f32 %v426, 0.0
    %v490 = vmax.f32 %v431, 0.0
    %v491 = vmax.f32 %v436, 0.0
    %v492 = vmax.f32 %v441, 0.0
    %v493 = vmax.f32 %v446, 0.0
    %v494 = vmax.f32 %v451, 0.0
    %v495 = vmax.f32 %v456, 0.0
    %v496 = vmax.f32 %v461, 0.0
    %v497 = vmax.f32 %v466, 0.0
    %v498 = vmax.f32 %v471, 0.0
    %v499 = vld [vmem:[%s2] sm:$0xff]
    %v500 = vld [vmem:[%s2 + $0x8] sm:$0xff]
    %v501 = vld [vmem:[%s2 + $0x10] sm:$0xff]
    %v502 = vld [vmem:[%s2 + $0x18] sm:$0xff]
    %v503 = vld [vmem:[%s2 + $0x20] sm:$0xff]
    %v504 = vld [vmem:[%s2 + $0x28] sm:$0xff]
    %v505 = vld [vmem:[%s2 + $0x30] sm:$0xff]
    %v506 = vld [vmem:[%s2 + $0x38] sm:$0xff]
    %v507 = vld [vmem:[%s2 + $0x40] sm:$0xff]
    %v508 = vld [vmem:[%s2 + $0x48] sm:$0xff]
    %v509 = vld [vmem:[%s2 + $0x50] sm:$0xff]
    %v510 = vld [vmem:[%s2 + $0x58] sm:$0xff]
    %v511 = vld [vmem:[%s2 + $0x60] sm:$0xff]
    %v512 = vld [vmem:[%s2 + $0x68] sm:$0xff]
    %v513 = vld [vmem:[%s2 + $0x70] sm:$0xff]
    %v514 = vld [vmem:[%s2 + $0x78] sm:$0xff]
    %v515 = vld [vmem:[%s2 + $0x80] sm:$0xff]
    %v516 = vld [vmem:[%s2 + $0x88] sm:$0xff]
    %v517 = vld [vmem:[%s2 + $0x90] sm:$0xff]
    %v518 = vld [vmem:[%s2 + $0x98] sm:$0xff]
    %v519 = vld [vmem:[%s2 + $0xa0] sm:$0xff]
    %v520 = vld [vmem:[%s2 + $0xa8] sm:$0xff]
    %v521 = vld [vmem:[%s2 + $0xb0] sm:$0xff]
    %v522 = vld [vmem:[%s2 + $0xb8] sm:$0xff]
    %v523 = vld [vmem:[%s2 + $0xc0] sm:$0xf]
    %v524 = vld [vmem:[%s2 + $0xc8] sm:$0xf]
    %525 = vset.pattern.permute.xlu0 1
    %526 = vperm.xlu0 %525, %v27
    %v527 = vpop.permute.xlu0 %526
    %529 = vset.pattern.permute.xlu0 1
    %530 = vperm.xlu0 %529, %v28
    %v531 = vpop.permute.xlu0 %530
    %533 = vset.pattern.permute.xlu0 1
    %534 = vperm.xlu0 %533, %v29
    %v535 = vpop.permute.xlu0 %534
    %537 = vset.pattern.permute.xlu0 1
    %538 = vperm.xlu0 %537, %v30
    %v539 = vpop.permute.xlu0 %538
    %541 = vset.pattern.permute.xlu0 1
    %542 = vperm.xlu0 %541, %v31
    %v543 = vpop.permute.xlu0 %542
    %545 = vset.pattern.permute.xlu0 1
    %546 = vperm.xlu0 %545, %v32
    %v547 = vpop.permute.xlu0 %546
    %549 = vset.pattern.permute.xlu0 1
    %550 = vperm.xlu0 %549, %v33
    %v551 = vpop.permute.xlu0 %550
    %553 = vset.pattern.permute.xlu0 1
    %554 = vperm.xlu0 %553, %v34
    %v555 = vpop.permute.xlu0 %554
    %557 = vset.pattern.permute.xlu0 1
    %558 = vperm.xlu0 %557, %v35
    %v559 = vpop.permute.xlu0 %558
    %561 = vset.pattern.permute.xlu0 1
    %562 = vperm.xlu0 %561, %v36
    %v563 = vpop.permute.xlu0 %562
    %565 = vset.pattern.permute.xlu0 1
    %566 = vperm.xlu0 %565, %v37
    %v567 = vpop.permute.xlu0 %566
    %569 = vset.pattern.permute.xlu0 1
    %570 = vperm.xlu0 %569, %v38
    %v571 = vpop.permute.xlu0 %570
    %574 = vset.pattern.permute.xlu0 1
    %575 = vperm.xlu0 %574, %v52
    %v576 = vpop.permute.xlu0 %575
    %vm578 = vcmask 588800
    %v580 = vsel %vm578, %v500, 0
    %v583 = vsel %vm578, %v502, 0
    %v586 = vsel %vm578, %v504, 0
    %v589 = vsel %vm578, %v506, 0
    %v592 = vsel %vm578, %v508, 0
    %v595 = vsel %vm578, %v510, 0
    %v598 = vsel %vm578, %v512, 0
    %v601 = vsel %vm578, %v514, 0
    %v604 = vsel %vm578, %v516, 0
    %v607 = vsel %vm578, %v518, 0
    %v610 = vsel %vm578, %v520, 0
    %v613 = vsel %vm578, %v522, 0
    %v616 = vsel %vm578, %v524, 0
    %618 = vmatprep.subr.mxu0 0.0
    %619 = vmatpush1.msra.mxu0 %v474
    %620 = vmatprep.subr.mxu0 0.0
    %621 = vmatpush1.msra.mxu0 %v475
    %622 = vmatprep.subr.mxu0 0.0
    %623 = vmatpush1.msra.mxu0 %v476
    %624 = vmatprep.subr.mxu0 0.0
    %625 = vmatpush1.msra.mxu0 %v477
    %626 = vmatprep.subr.mxu0 0.0
    %627 = vmatpush1.msra.mxu0 %v478
    %628 = vmatprep.subr.mxu0 0.0
    %629 = vmatpush1.msra.mxu0 %v479
    %630 = vmatprep.subr.mxu0 0.0
    %631 = vmatpush1.msra.mxu0 %v480
    %632 = vmatprep.subr.mxu0 0.0
    %633 = vmatpush1.msra.mxu0 %v481
    %634 = vmatprep.subr.mxu0 0.0
    %635 = vmatpush1.msra.mxu0 %v482
    %636 = vmatprep.subr.mxu0 0.0
    %637 = vmatpush1.msra.mxu0 %v483
    %638 = vmatprep.subr.mxu0 0.0
    %639 = vmatpush1.msra.mxu0 %v484
    %640 = vmatprep.subr.mxu0 0.0
    %641 = vmatpush1.msra.mxu0 %v485
    %642 = vmatprep.subr.mxu0 0.0
    %643 = vmatpush1.msra.mxu0 %v486
    %644 = vmatprep.subr.mxu0 0.0
    %645 = vmatpush1.msra.mxu0 %v487
    %646 = vmatprep.subr.mxu0 0.0
    %647 = vmatpush1.msra.mxu0 %v488
    %648 = vmatprep.subr.mxu0 0.0
    %649 = vmatpush1.msra.mxu0 %v489
    %650 = vmatprep.subr.mxu0 0.0
    %651 = vmatpush1.msra.mxu0 %v490
    %652 = vmatprep.subr.mxu0 0.0
    %653 = vmatpush1.msra.mxu0 %v491
    %654 = vmatprep.subr.mxu0 0.0
    %655 = vmatpush1.msra.mxu0 %v492
    %656 = vmatprep.subr.mxu0 0.0
    %657 = vmatpush1.msra.mxu0 %v493
    %658 = vmatprep.subr.mxu0 0.0
    %659 = vmatpush1.msra.mxu0 %v494
    %660 = vmatprep.subr.mxu0 0.0
    %661 = vmatpush1.msra.mxu0 %v495
    %662 = vmatprep.subr.mxu0 0.0
    %663 = vmatpush1.msra.mxu0 %v496
    %664 = vmatprep.subr.mxu0 0.0
    %665 = vmatpush1.msra.mxu0 %v497
    %666 = vmatprep.subr.mxu0 0.0
    %667 = vmatpush1.msra.mxu0 %v498
    %668 = vmatprep.subr.mxu0 0.0
    %669 = vmatpush1.msra.mxu0 0.0
    %670 = vmatprep.subr.mxu0 0.0
    %671 = vmatpush1.msra.mxu0 0.0
    %672 = vmatprep.subr.mxu0 0.0
    %673 = vmatpush1.msra.mxu0 0.0
    %674 = vmatprep.subr.mxu0 0.0
    %675 = vmatpush1.msra.mxu0 0.0
    %676 = vmatprep.subr.mxu0 0.0
    %677 = vmatpush1.msra.mxu0 0.0
    %678 = vmatprep.subr.mxu0 0.0
    %679 = vmatpush1.msra.mxu0 0.0
    %680 = vmatprep.subr.mxu0 0.0
    %681 = vmatpush1.msra.mxu0 0.0
    %682 = vmatprep.mubr.f32.mxu0 %v580
    %683 = vmatmul.mubr.f32.gmra.mrb[0].mxu0 %v499
    %v684 = vpop.f32.mrb[0].mxu0
    %v685 = vadd.f32 %v527, %v684
    %v686 = vpop.f32.mrb[0].mxu0
    %687 = vmatprep.mubr.f32.mxu0 %v583
    %688 = vmatmul.mubr.f32.gmra.mrb[0].mxu0 %v501
    %v689 = vpop.f32.mrb[0].mxu0
    %v690 = vadd.f32 %v531, %v689
    %v691 = vpop.f32.mrb[0].mxu0
    %692 = vmatprep.mubr.f32.mxu0 %v586
    %693 = vmatmul.mubr.f32.gmra.mrb[0].mxu0 %v503
    %v694 = vpop.f32.mrb[0].mxu0
    %v695 = vadd.f32 %v535, %v694
    %v696 = vpop.f32.mrb[0].mxu0
    %697 = vmatprep.mubr.f32.mxu0 %v589
    %698 = vmatmul.mubr.f32.gmra.mrb[0].mxu0 %v505
    %v699 = vpop.f32.mrb[0].mxu0
    %v700 = vadd.f32 %v539, %v699
    %v701 = vpop.f32.mrb[0].mxu0
    %702 = vmatprep.mubr.f32.mxu0 %v592
    %703 = vmatmul.mubr.f32.gmra.mrb[0].mxu0 %v507
    %v704 = vpop.f32.mrb[0].mxu0
    %v705 = vadd.f32 %v543, %v704
    %v706 = vpop.f32.mrb[0].mxu0
    %707 = vmatprep.mubr.f32.mxu0 %v595
    %708 = vmatmul.mubr.f32.gmra.mrb[0].mxu0 %v509
    %v709 = vpop.f32.mrb[0].mxu0
    %v710 = vadd.f32 %v547, %v709
    %v711 = vpop.f32.mrb[0].mxu0
    %712 = vmatprep.mubr.f32.mxu0 %v598
    %713 = vmatmul.mubr.f32.gmra.mrb[0].mxu0 %v511
    %v714 = vpop.f32.mrb[0].mxu0
    %v715 = vadd.f32 %v551, %v714
    %v716 = vpop.f32.mrb[0].mxu0
    %717 = vmatprep.mubr.f32.mxu0 %v601
    %718 = vmatmul.mubr.f32.gmra.mrb[0].mxu0 %v513
    %v719 = vpop.f32.mrb[0].mxu0
    %v720 = vadd.f32 %v555, %v719
    %v721 = vpop.f32.mrb[0].mxu0
    %722 = vmatprep.mubr.f32.mxu0 %v604
    %723 = vmatmul.mubr.f32.gmra.mrb[0].mxu0 %v515
    %v724 = vpop.f32.mrb[0].mxu0
    %v725 = vadd.f32 %v559, %v724
    %v726 = vpop.f32.mrb[0].mxu0
    %727 = vmatprep.mubr.f32.mxu0 %v607
    %728 = vmatmul.mubr.f32.gmra.mrb[0].mxu0 %v517
    %v729 = vpop.f32.mrb[0].mxu0
    %v730 = vadd.f32 %v563, %v729
    %v731 = vpop.f32.mrb[0].mxu0
    %732 = vmatprep.mubr.f32.mxu0 %v610
    %733 = vmatmul.mubr.f32.gmra.mrb[0].mxu0 %v519
    %v734 = vpop.f32.mrb[0].mxu0
    %v735 = vadd.f32 %v567, %v734
    %v736 = vpop.f32.mrb[0].mxu0
    %737 = vmatprep.mubr.f32.mxu0 %v613
    %738 = vmatmul.mubr.f32.gmra.mrb[0].mxu0 %v521
    %v739 = vpop.f32.mrb[0].mxu0
    %v740 = vadd.f32 %v571, %v739
    %v741 = vpop.f32.mrb[0].mxu0
    %742 = vmatprep.mubr.f32.mxu0 %v616
    %743 = vmatmul.mubr.f32.gmra.mrb[0].mxu0 %v523
    %v744 = vpop.f32.mrb[0].mxu0
    %v745 = vadd.f32 %v576, %v744
    %v746 = vpop.f32.mrb[0].mxu0
    %747 = vdwg.mxu0
    %v748 = vmax.f32 %v685, 0.0
    %v749 = vmax.f32 %v690, 0.0
    %v750 = vmax.f32 %v695, 0.0
    %v751 = vmax.f32 %v700, 0.0
    %v752 = vmax.f32 %v705, 0.0
    %v753 = vmax.f32 %v710, 0.0
    %v754 = vmax.f32 %v715, 0.0
    %v755 = vmax.f32 %v720, 0.0
    %v756 = vmax.f32 %v725, 0.0
    %v757 = vmax.f32 %v730, 0.0
    %v758 = vmax.f32 %v735, 0.0
    %v759 = vmax.f32 %v740, 0.0
    %v760 = vmax.f32 %v745, 0.0
    %v761 = vld [vmem:[%s3] sm:$0x7]
    %763 = vset.pattern.permute.xlu0 2
    %764 = vperm.xlu0 %763, %v53
    %v765 = vpop.permute.xlu0 %764
    %vm767 = vcmask 818176
    %v769 = vsel %vm767, %v761, 0
    %vm771 = vcmask 1043456
    %v773 = vsel %vm771, %v760, 0
    %775 = vmatprep.subr.mxu0 0.0
    %776 = vmatpush1.msra.mxu0 %v748
    %777 = vmatprep.subr.mxu0 0.0
    %778 = vmatpush1.msra.mxu0 %v749
    %779 = vmatprep.subr.mxu0 0.0
    %780 = vmatpush1.msra.mxu0 %v750
    %781 = vmatprep.subr.mxu0 0.0
    %782 = vmatpush1.msra.mxu0 %v751
    %783 = vmatprep.subr.mxu0 0.0
    %784 = vmatpush1.msra.mxu0 %v752
    %785 = vmatprep.subr.mxu0 0.0
    %786 = vmatpush1.msra.mxu0 %v753
    %787 = vmatprep.subr.mxu0 0.0
    %788 = vmatpush1.msra.mxu0 %v754
    %789 = vmatprep.subr.mxu0 0.0
    %790 = vmatpush1.msra.mxu0 %v755
    %791 = vmatprep.subr.mxu0 0.0
    %792 = vmatpush1.msra.mxu0 %v756
    %793 = vmatprep.subr.mxu0 0.0
    %794 = vmatpush1.msra.mxu0 %v757
    %795 = vmatprep.subr.mxu0 0.0
    %796 = vmatpush1.msra.mxu0 %v758
    %797 = vmatprep.subr.mxu0 0.0
    %798 = vmatpush1.msra.mxu0 %v759
    %799 = vmatprep.subr.mxu0 0.0
    %800 = vmatpush1.msra.mxu0 %v773
    %801 = vmatprep.subr.mxu0 0.0
    %802 = vmatpush1.msra.mxu0 0.0
    %803 = vmatprep.subr.mxu0 0.0
    %804 = vmatpush1.msra.mxu0 0.0
    %805 = vmatprep.subr.mxu0 0.0
    %806 = vmatpush1.msra.mxu0 0.0
    %807 = vmatprep.subr.mxu0 0.0
    %808 = vmatpush1.msra.mxu0 0.0
    %809 = vmatprep.subr.mxu0 0.0
    %810 = vmatpush1.msra.mxu0 0.0
    %811 = vmatprep.subr.mxu0 0.0
    %812 = vmatpush1.msra.mxu0 0.0
    %813 = vmatprep.subr.mxu0 0.0
    %814 = vmatpush1.msra.mxu0 0.0
    %815 = vmatprep.subr.mxu0 0.0
    %816 = vmatpush1.msra.mxu0 0.0
    %817 = vmatprep.subr.mxu0 0.0
    %818 = vmatpush1.msra.mxu0 0.0
    %819 = vmatprep.subr.mxu0 0.0
    %820 = vmatpush1.msra.mxu0 0.0
    %821 = vmatprep.subr.mxu0 0.0
    %822 = vmatpush1.msra.mxu0 0.0
    %823 = vmatprep.subr.mxu0 0.0
    %824 = vmatpush1.msra.mxu0 0.0
    %825 = vmatprep.subr.mxu0 0.0
    %826 = vmatpush1.msra.mxu0 0.0
    %827 = vmatprep.subr.mxu0 0.0
    %828 = vmatpush1.msra.mxu0 0.0
    %829 = vmatprep.subr.mxu0 0.0
    %830 = vmatpush1.msra.mxu0 0.0
    %831 = vmatprep.subr.mxu0 0.0
    %832 = vmatpush1.msra.mxu0 0.0
    %833 = vmatprep.subr.mxu0 0.0
    %834 = vmatpush1.msra.mxu0 0.0
    %835 = vmatprep.subr.mxu0 0.0
    %836 = vmatpush1.msra.mxu0 0.0
    %837 = vmatprep.subr.mxu0 0.0
    %838 = vmatpush1.msra.mxu0 0.0
    %839 = vmatprep.mubr.f32.mxu0 0.0
    %840 = vmatmul.mubr.f32.gmra.mrb[0].mxu0 %v769
    %v841 = vpop.f32.mrb[0].mxu0
    %v842 = vadd.f32 %v765, %v841
    %v843 = vpop.f32.mrb[0].mxu0
    %844 = vdwg.mxu0
    %vm845 = vcmask 59392
    %v846 = vsel %vm845, %v842, -inf
    %v847 = vrot.slane %v846, 4
    %v848 = vmax.f32 %v846, %v847
    %v849 = vrot.slane %v848, 2
    %v850 = vmax.f32 %v848, %v849
    %v851 = vrot.slane %v850, 1
    %v852 = vmax.f32 %v850, %v851
    %v853 = vsub.f32 %v842, %v852
    %v854 = vmul.f32 %v853, 1.442695
    %v855 = vpow.pop %v854
    %v856 = vsel %vm845, %v855, 0.0
    %v857 = vrot.slane %v856, 4
    %v858 = vadd.f32 %v856, %v857
    %v859 = vrot.slane %v858, 2
    %v860 = vadd.f32 %v858, %v859
    %v861 = vrot.slane %v860, 1
    %v862 = vadd.f32 %v860, %v861
    %v863 = vrcp.pop %v862
    %v864 = vmul.f32 %v855, %v863
    %865 = vst.msk [vmem:[#allocation2] sm:$0x7] %vm845, %v864
    // Predicated region
    $region22: #{tpu_custom_call.1} parent=1 // pred_check
      _
    $region23: #{tpu_custom_call.1} parent=1 // pred_check_branch
      %867 = sbr.rel (0) target = $region25
    $region24: #{tpu_custom_call.1} parent=1 // pred_region
      %s869 = ssub.s32 64, 64
      %870 = vsyncadd [#allocation3], %s869
      %s872 = sshll.u32 [#allocation2], 4
      %s873 = int_to_ptr.vmem [resolvable:$true] %s872
      %875 = dma.vmem_to_hbm [thread:$0]  %s873, 64, %s5, [#allocation3]
    $region25: #{tpu_custom_call.1} parent=1 // pred_fallthru
      _
    // Predicated region
    $region26: #{tpu_custom_call.1} parent=1 // pred_check
      _
    $region27: #{tpu_custom_call.1} parent=1 // pred_check_branch
      %877 = sbr.rel (0) target = $region29
    $region28: #{tpu_custom_call.1} parent=1 // pred_region
      %878 = dma.done [#allocation3], 64
    $region29: #{tpu_custom_call.1} parent=1 // pred_fallthru
      _
    %879 = vsyncpa [#allocation3], 1

</llo_original>
